<compile_context>
chip_gen: v5e
topology: v5e:2x2
jax: 0.10.0
libtpu: 0.0.40
codegen_flags: <defaults>
</compile_context>

<pallas_src>
import functools
import math

import jax
import jax.numpy as jnp
from jax.experimental import pallas as pl
from jax.experimental.pallas import tpu as pltpu

LANE = 128  # vreg lane width


def _round_up(x, m):
    return ((x + m - 1) // m) * m


def _cdiv(a, b):
    return (a + b - 1) // b


def _layer_dims(latent_features, action_dim, num_layers=3):
    """Reproduce ActionDecoder.__init__ dimension interpolation (int() truncation)."""
    dims = []
    for i in range(num_layers):
        d_in = int(latent_features + (action_dim - latent_features) * i / num_layers)
        d_out = int(latent_features + (action_dim - latent_features) * (i + 1) / num_layers)
        dims.append((d_in, d_out))
    return dims


# ---------------------------------------------------------------------------
# Parameter packing (transposed layout):
#   slab (rows, 128):  block i = W_i^T  (out-features on rows, in-features on
#                      lanes), zero-padded; row offsets are sublane-aligned.
#   bias (rows, 1) f32: b_i at the same row offsets (stays f32 even when the
#                      weight slab is bf16).
# ---------------------------------------------------------------------------
def pack_params(params, *, param_dtype=jnp.float32):
    assert len(params) == 3, "fused kernel implements the num_layers=3 default"
    row_gran = 8 if jnp.dtype(param_dtype).itemsize == 4 else 16

    d_ins, d_outs = [], []
    for i, (w, b) in enumerate(params):
        d_in, d_out = w.shape
        assert b.reshape(-1).shape == (d_out,)
        assert d_in <= LANE, "layer in-dim must fit one 128-lane tile"
        if i > 0:
            assert d_in == d_outs[-1], "layer in-dim must equal previous out-dim"
        d_ins.append(d_in)
        d_outs.append(d_out)

    p_outs = [_round_up(d, row_gran) for d in d_outs]
    offs = (0, p_outs[0], p_outs[0] + p_outs[1], p_outs[0] + p_outs[1] + p_outs[2])
    rows = offs[3]

    slab = jnp.zeros((rows, LANE), param_dtype)
    bias = jnp.zeros((rows, 1), jnp.float32)
    for i, (w, b) in enumerate(params):
        r = offs[i]
        slab = slab.at[r : r + d_outs[i], : d_ins[i]].set(w.T.astype(param_dtype))
        bias = bias.at[r : r + d_outs[i], 0].set(b.reshape(-1).astype(jnp.float32))

    # Contraction dims per layer: layer 0 contracts the real latent dim;
    # layers 1/2 contract the (row-padded) previous hidden size.  Padded
    # lanes/rows are zero, so they contribute nothing.
    k_dims = (d_ins[0], p_outs[0], p_outs[1])
    return slab, bias, offs, k_dims


# ---------------------------------------------------------------------------
# Fused 3-layer MLP kernel, transposed orientation: h^T = W^T @ x^T.
#   xt_ref: (latent, TB)   f32   batch tile (batch on lanes)
#   w_ref : (rows, 128)    f32/bf16 packed W^T slab (VMEM-resident)
#   b_ref : (rows, 1)      f32   packed bias column (VMEM-resident)
#   o_ref : (p3, TB)       f32   lane-dense output tile
# ---------------------------------------------------------------------------
def _mlp3t_kernel(xt_ref, w_ref, b_ref, o_ref, *, row_offs, k_dims, mxu_dtype):
    o0, o1, o2, o3 = row_offs
    k0, k1, k2 = k_dims

    # layer 0 + activation_fn (tanh); accumulate in f32, bias/tanh in f32
    h = xt_ref[...].astype(mxu_dtype)                               # (k0, TB)
    acc = jnp.dot(w_ref[o0:o1, 0:k0], h, preferred_element_type=jnp.float32)
    h = jnp.tanh(acc + b_ref[o0:o1, :])                             # (p1, TB)

    # layer 1 + activation_fn (tanh)
    acc = jnp.dot(w_ref[o1:o2, 0:k1], h.astype(mxu_dtype),
                  preferred_element_type=jnp.float32)
    h = jnp.tanh(acc + b_ref[o1:o2, :])                             # (p2, TB)

    # layer 2 + final_activation_fn (tanh); lane-dense store
    acc = jnp.dot(w_ref[o2:o3, 0:k2], h.astype(mxu_dtype),
                  preferred_element_type=jnp.float32)
    o_ref[...] = jnp.tanh(acc + b_ref[o2:o3, :]).astype(o_ref.dtype)


# ---------------------------------------------------------------------------
# Wrapper: features-on-sublanes, batch-tiled over lanes, weights VMEM-resident.
# ---------------------------------------------------------------------------
def action_decoder_forward(x, params, *, tile_batch=None, param_dtype=jnp.float32):
    """x: (B, latent_features). params: list of 3 (W[in,out], b[out]).

    param_dtype=jnp.bfloat16 enables the fast bf16 MXU path (v6e/v7x);
    accumulation, bias and tanh stay in f32.
    """
    B, latent = x.shape
    action_dim = params[-1][0].shape[1]
    assert params[0][0].shape[0] == latent

    slab, bias, row_offs, k_dims = pack_params(params, param_dtype=param_dtype)
    rows = slab.shape[0]
    p3 = row_offs[3] - row_offs[2]          # padded output-feature rows

    # Batch tile (lanes of every tensor): multiple of 128, >= 2 grid steps
    # whenever B > 128 (keeps both v7x TensorCores busy), capped at 1024 to
    # amortize per-step pipeline overhead on single-TC v5e/v6e.
    if tile_batch is not None:
        TB = int(tile_batch)
    elif B <= LANE:
        TB = LANE
    else:
        TB = min(1024, _round_up(_cdiv(B, 2), LANE))

    x_f32 = x.astype(jnp.float32)
    if B < TB:
        # Only tiny batches hit this: zero-pad lanes to one tile (a few KB) so
        # every MXU operand is lane-aligned.  Large batches are NOT padded —
        # Pallas masks the ragged last tile (the MLP is column-independent).
        xt = jnp.zeros((latent, TB), jnp.float32).at[:, :B].set(x_f32.T)
        b_lanes = TB
    else:
        xt = x_f32.T                         # (latent, B): batch on lanes
        b_lanes = B

    grid = (_cdiv(b_lanes, TB),)
    kernel = functools.partial(
        _mlp3t_kernel, row_offs=row_offs, k_dims=k_dims,
        mxu_dtype=jnp.dtype(param_dtype))

    out_t = pl.pallas_call(
        kernel,
        out_shape=jax.ShapeDtypeStruct((p3, b_lanes), jnp.float32),
        grid_spec=pltpu.PrefetchScalarGridSpec(
            num_scalar_prefetch=0,
            grid=grid,
            in_specs=[
                # x^T: tiled over the batch (lanes), pipelined/double-buffered
                pl.BlockSpec((latent, TB), lambda i: (0, i)),
                # weight slab: constant block index -> one DMA, VMEM-resident
                pl.BlockSpec((rows, LANE), lambda i: (0, 0)),
                # bias column: constant block index -> one tiny DMA, resident
                pl.BlockSpec((rows, 1), lambda i: (0, 0)),
            ],
            # lane-dense (p3, TB) output tile
            out_specs=pl.BlockSpec((p3, TB), lambda i: (0, i)),
        ),
        compiler_params=pltpu.CompilerParams(
            dimension_semantics=("parallel",),   # 2 TCs on v7x shard the batch
        ),
    )(xt, slab, bias)

    # Tiny fixup: drop <=16 padded feature rows / padded lanes, back to (B, A).
    return out_t[:action_dim, :B].T


# ---------------------------------------------------------------------------
# Init + pure-JAX reference
# ---------------------------------------------------------------------------
def init_params(key, latent_features, action_dim, num_layers=3):
    """PyTorch Linear default init (uniform +-1/sqrt(fan_in)); W stored as (in,out)."""
    dims = _layer_dims(latent_features, action_dim, num_layers)
    params = []
    for d_in, d_out in dims:
        kw, kb, key = jax.random.split(key, 3)
        bound = 1.0 / math.sqrt(d_in)
        w = jax.random.uniform(kw, (d_in, d_out), jnp.float32, -bound, bound)
        b = jax.random.uniform(kb, (d_out,), jnp.float32, -bound, bound)
        params.append((w, b))
    return params


def reference_forward(x, params):
    h = x
    n = len(params)
    for i, (w, b) in enumerate(params):
        h = h @ w + b
        if i < n - 1:
            h = jnp.tanh(h)      # activation_fn (default nn.Tanh)
    return jnp.tanh(h)           # final_activation_fn


if __name__ == "__main__":
    latent_features = 32   # input latent dim
    action_dim = 8         # np.prod(action_space.shape)
    num_layers = 3

    key = jax.random.PRNGKey(0)
    k_p, k_x, k_x2 = jax.random.split(key, 3)
    params = init_params(k_p, latent_features, action_dim, num_layers)

    # Small per-step case (B=2): single grid step, lane-padded tiny batch.
    x_small = jax.random.normal(k_x, (2, latent_features), jnp.float32)
    out_small = jax.block_until_ready(action_decoder_forward(x_small, params))
    ref_small = reference_forward(x_small, params)
    assert out_small.shape == (2, action_dim)
    assert jnp.allclose(out_small, ref_small, atol=1e-4, rtol=1e-4), "mismatch (B=2)"

    # Larger batch: TB=512, grid=(2,), ragged 488-column edge tile (no padding).
    x_big = jax.random.normal(k_x2, (1000, latent_features), jnp.float32)
    out_big = jax.block_until_ready(action_decoder_forward(x_big, params))
    ref_big = reference_forward(x_big, params)
    assert out_big.shape == (1000, action_dim)
    assert jnp.allclose(out_big, ref_big, atol=1e-4, rtol=1e-4), "mismatch (B=1000)"

    # Opt-in bf16 MXU path (v6e/v7x fast path); f32 accumulate + f32 bias/tanh.
    out_bf16 = jax.block_until_ready(
        action_decoder_forward(x_big, params, param_dtype=jnp.bfloat16))
    assert out_bf16.shape == (1000, action_dim)
    assert jnp.max(jnp.abs(out_bf16 - ref_big)) < 5e-2, "mismatch (bf16 path)"

    print("KERNEL_OK")
</pallas_src>

<mosaic_0001>
module attributes {stable_mosaic.version = 11 : i64} {
  func.func @_mlp3t_kernel(%arg0: i32, %arg1: memref<32x128xf32, #tpu.memory_space<vmem>>, %arg2: memref<48x128xf32, #tpu.memory_space<vmem>>, %arg3: memref<48x1xf32, #tpu.memory_space<vmem>>, %arg4: memref<8x128xf32, #tpu.memory_space<vmem>>) attributes {dimension_semantics = [#tpu.dimension_semantics<parallel>], iteration_bounds = array<i64: 1>, scalar_prefetch = 0 : i64, scratch_operands = 0 : i64, tpu.core_type = #tpu.core_type<tc>, window_params = [{transform_indices = @transform_0, window_bounds = array<i64: 32, 128>}, {pipeline_mode = #tpu.pipeline_mode<synchronous>, transform_indices = @transform_1, window_bounds = array<i64: 48, 128>}, {pipeline_mode = #tpu.pipeline_mode<synchronous>, transform_indices = @transform_2, window_bounds = array<i64: 48, 1>}, {transform_indices = @transform_3, window_bounds = array<i64: 8, 128>}]} {
    %c0 = arith.constant 0 : index
    %c0_0 = arith.constant 0 : index
    %0 = vector.load %arg1[%c0, %c0_0] : memref<32x128xf32, #tpu.memory_space<vmem>>, vector<32x128xf32>
    %c0_1 = arith.constant 0 : index
    %c0_2 = arith.constant 0 : index
    %1 = vector.load %arg2[%c0_1, %c0_2] : memref<48x128xf32, #tpu.memory_space<vmem>>, vector<24x32xf32>
    %cst = arith.constant dense<0.000000e+00> : vector<24x128xf32>
    %2 = tpu.matmul %1, %0, %cst {dimension_numbers = #tpu.dot_dimension_numbers<[1], [0], [0], [1], [0, 0, 1, 1], [], []>} : vector<24x32xf32>, vector<32x128xf32>, vector<24x128xf32> -> vector<24x128xf32>
    %c0_3 = arith.constant 0 : index
    %c0_4 = arith.constant 0 : index
    %3 = vector.load %arg3[%c0_3, %c0_4] : memref<48x1xf32, #tpu.memory_space<vmem>>, vector<24x1xf32>
    %4 = vector.broadcast %3 : vector<24x1xf32> to vector<24x128xf32>
    %5 = arith.addf %2, %4 : vector<24x128xf32>
    %6 = math.tanh %5 : vector<24x128xf32>
    %c24 = arith.constant 24 : index
    %c0_5 = arith.constant 0 : index
    %7 = vector.load %arg2[%c24, %c0_5] : memref<48x128xf32, #tpu.memory_space<vmem>>, vector<16x24xf32>
    %cst_6 = arith.constant dense<0.000000e+00> : vector<16x128xf32>
    %8 = tpu.matmul %7, %6, %cst_6 {dimension_numbers = #tpu.dot_dimension_numbers<[1], [0], [0], [1], [0, 0, 1, 1], [], []>} : vector<16x24xf32>, vector<24x128xf32>, vector<16x128xf32> -> vector<16x128xf32>
    %c24_7 = arith.constant 24 : index
    %c0_8 = arith.constant 0 : index
    %9 = vector.load %arg3[%c24_7, %c0_8] : memref<48x1xf32, #tpu.memory_space<vmem>>, vector<16x1xf32>
    %10 = vector.broadcast %9 : vector<16x1xf32> to vector<16x128xf32>
    %11 = arith.addf %8, %10 : vector<16x128xf32>
    %12 = math.tanh %11 : vector<16x128xf32>
    %c40 = arith.constant 40 : index
    %c0_9 = arith.constant 0 : index
    %13 = vector.load %arg2[%c40, %c0_9] : memref<48x128xf32, #tpu.memory_space<vmem>>, vector<8x16xf32>
    %cst_10 = arith.constant dense<0.000000e+00> : vector<8x128xf32>
    %14 = tpu.matmul %13, %12, %cst_10 {dimension_numbers = #tpu.dot_dimension_numbers<[1], [0], [0], [1], [0, 0, 1, 1], [], []>} : vector<8x16xf32>, vector<16x128xf32>, vector<8x128xf32> -> vector<8x128xf32>
    %c40_11 = arith.constant 40 : index
    %c0_12 = arith.constant 0 : index
    %15 = vector.load %arg3[%c40_11, %c0_12] : memref<48x1xf32, #tpu.memory_space<vmem>>, vector<8x1xf32>
    %16 = vector.broadcast %15 : vector<8x1xf32> to vector<8x128xf32>
    %17 = arith.addf %14, %16 : vector<8x128xf32>
    %18 = math.tanh %17 : vector<8x128xf32>
    %c0_13 = arith.constant 0 : index
    %c0_14 = arith.constant 0 : index
    %19 = vector.load %arg4[%c0_13, %c0_14] : memref<8x128xf32, #tpu.memory_space<vmem>>, vector<8x128xf32>
    tpu.vector_store %arg4[%c0_13, %c0_14], %18 {strides = array<i32>} : memref<8x128xf32, #tpu.memory_space<vmem>>, vector<8x128xf32>,
    return
  }
  func.func @transform_0(%arg0: i32) -> (i32, i32) {
    %c0_i32 = arith.constant 0 : i32
    %c0_i32_0 = arith.constant 0 : i32
    return %c0_i32, %arg0 : i32, i32
  }
  func.func @transform_1(%arg0: i32) -> (i32, i32) {
    %c0_i32 = arith.constant 0 : i32
    %c0_i32_0 = arith.constant 0 : i32
    %c0_i32_1 = arith.constant 0 : i32
    return %c0_i32, %c0_i32_0 : i32, i32
  }
  func.func @transform_2(%arg0: i32) -> (i32, i32) {
    %c0_i32 = arith.constant 0 : i32
    %c0_i32_0 = arith.constant 0 : i32
    %c0_i32_1 = arith.constant 0 : i32
    return %c0_i32, %c0_i32_0 : i32, i32
  }
  func.func @transform_3(%arg0: i32) -> (i32, i32) {
    %c0_i32 = arith.constant 0 : i32
    %c0_i32_0 = arith.constant 0 : i32
    return %c0_i32, %arg0 : i32, i32
  }
}

</mosaic_0001>

<llo_original>
// kernel: tpu_custom_call.1
$region0: #{tpu_custom_call.1}
  #allocation0 [shape = 'u32[]', space=smem, size = 0x4, offset = 0x4, fixed_abs, tag = 'smem constant byte address 0x4 - core index']
  #allocation1 [shape = 'u32[72,128]{1,0:T(1,128)}', space=vmem, size = 0x9000, scoped, tag = 'internal scratch']
  %s0 = inlined_call_operand.hbm [shape: f32[32,128], index: 0, kind: input, shape index: {}]
  %s1 = inlined_call_operand.vmem [shape: f32[48,128], index: 1, kind: input, shape index: {}]
  %s2 = inlined_call_operand.vmem [shape: f32[48,1], index: 2, kind: input, shape index: {}]
  %s3 = inlined_call_operand.hbm [shape: f32[8,128], index: 3, kind: output, shape index: {}]
  %s4 = sld [smem:[#allocation0]]
  $region26: #{tpu_custom_call.1} parent=0
    _
  %s6 = ssub.s32 1, %s4
  %s7 = scalar_select 0, %s6, %s4
  $region1: #{tpu_custom_call.1} parent=0
    #allocation2 [shape = 'u8[16384]{0}', space=vmem, size = 0x4000, scoped, tag = 'input window, operand 0, single buffered']
    #allocation3 [shape = 's32[1]{0}', space=sflag, size = 0x4, scoped, tag = 'scoped memory for tpu_custom_call.1']
    #allocation4 [shape = 's32[1]{0}', space=sflag, size = 0x4, scoped, tag = 'scoped memory for tpu_custom_call.1']
    #allocation5 [shape = 'u8[4096]{0}', space=vmem, size = 0x1000, scoped, tag = 'output window, operand 0, single buffered']
    %8 = vsyncpa [#allocation3], 0
    %9 = vsyncpa [#allocation4], 0
    // Predicated region
    $region2: #{tpu_custom_call.1} parent=1 // pred_check
      _
    $region3: #{tpu_custom_call.1} parent=1 // pred_check_branch
      %11 = sbr.rel (0) target = $region5
    $region4: #{tpu_custom_call.1} parent=1 // pred_region
      %13 = vsyncadd [#allocation3], 0
      %s14 = sshll.u32 %s0, 4
      %s15 = int_to_ptr.hbm [resolvable:$true] %s14
      %s16 = sshll.u32 [#allocation2], 4
      %s17 = int_to_ptr.vmem [resolvable:$true] %s16
      %22 = dma.hbm_to_vmem [thread:$0]  %s15, 512, %s17, [#allocation3], 128, 128, 8
    $region5: #{tpu_custom_call.1} parent=1 // pred_fallthru
      _
    // Predicated region
    $region6: #{tpu_custom_call.1} parent=1 // pred_check
      _
    $region7: #{tpu_custom_call.1} parent=1 // pred_check_branch
      %24 = sbr.rel (0) target = $region9
    $region8: #{tpu_custom_call.1} parent=1 // pred_region
      _
    $region9: #{tpu_custom_call.1} parent=1 // pred_fallthru
      _
    // Predicated region
    $region10: #{tpu_custom_call.1} parent=1 // pred_check
      _
    $region11: #{tpu_custom_call.1} parent=1 // pred_check_branch
      %26 = sbr.rel (0) target = $region13
    $region12: #{tpu_custom_call.1} parent=1 // pred_region
      _
    $region13: #{tpu_custom_call.1} parent=1 // pred_fallthru
      _
    // Predicated region
    $region14: #{tpu_custom_call.1} parent=1 // pred_check
      _
    $region15: #{tpu_custom_call.1} parent=1 // pred_check_branch
      %28 = sbr.rel (0) target = $region17
    $region16: #{tpu_custom_call.1} parent=1 // pred_region
      %30 = dma.done [#allocation3], 512
    $region17: #{tpu_custom_call.1} parent=1 // pred_fallthru
      _
    %v31 = vld [vmem:[#allocation2] sm:$0xff]
    %v32 = vld [vmem:[#allocation2 + $0x8] sm:$0xff]
    %v33 = vld [vmem:[#allocation2 + $0x10] sm:$0xff]
    %v34 = vld [vmem:[#allocation2 + $0x18] sm:$0xff]
    %v35 = vld [vmem:[%s1] sm:$0xff]
    %v36 = vld [vmem:[%s1 + $0x8] sm:$0xff]
    %v37 = vld [vmem:[%s1 + $0x10] sm:$0xff]
    %v38 = vld [vmem:[%s2] sm:$0xff]
    %v39 = vld [vmem:[%s2 + $0x8] sm:$0xff]
    %v40 = vld [vmem:[%s2 + $0x10] sm:$0xff]
    %42 = vset.pattern.permute.xlu0 0
    %43 = vperm.xlu0 %42, %v38
    %v44 = vpop.permute.xlu0 %43
    %47 = vset.pattern.permute.xlu0 0
    %48 = vperm.xlu0 %47, %v39
    %v49 = vpop.permute.xlu0 %48
    %52 = vset.pattern.permute.xlu0 0
    %53 = vperm.xlu0 %52, %v40
    %v54 = vpop.permute.xlu0 %53
    %vm56 = vcmask 261120
    %v58 = vsel %vm56, %v35, 0
    %v61 = vsel %vm56, %v36, 0
    %v64 = vsel %vm56, %v37, 0
    %66 = vmatpush.msra.mxu0 0.0
    %67 = vmatpush.msra.mxu0 0.0
    %68 = vmatpush.msra.mxu0 0.0
    %69 = vmatpush.msra.mxu0 0.0
    %70 = vmatpush.msra.mxu0 0.0
    %71 = vmatpush.msra.mxu0 0.0
    %72 = vmatpush.msra.mxu0 0.0
    %73 = vmatpush.msra.mxu0 0.0
    %74 = vmatpush.msra.mxu0 0.0
    %75 = vmatpush.msra.mxu0 0.0
    %76 = vmatpush.msra.mxu0 0.0
    %77 = vmatpush.msra.mxu0 0.0
    %78 = vmatpush.msra.mxu0 %v34
    %79 = vmatpush.msra.mxu0 %v33
    %80 = vmatpush.msra.mxu0 %v32
    %81 = vmatpush.msra.mxu0 %v31
    %82 = vmatmul.f32.gmra.mxu0 %v58
    %v83 = vpop.f32.mrf.mxu0
    %v84 = vadd.f32 %v44, %v83
    %85 = vmatmul.f32.gmra.mxu0 %v61
    %v86 = vpop.f32.mrf.mxu0
    %v87 = vadd.f32 %v49, %v86
    %88 = vmatmul.f32.gmra.mxu0 %v64
    %v89 = vpop.f32.mrf.mxu0
    %v90 = vadd.f32 %v54, %v89
    %91 = vdwg.mxu0
    %v92 = vtanh.pop %v84
    %v93 = vtanh.pop %v87
    %v94 = vtanh.pop %v90
    %v95 = vld [vmem:[%s1 + $0x18] sm:$0xff]
    %v96 = vld [vmem:[%s1 + $0x20] sm:$0xff]
    %v97 = vld [vmem:[%s2 + $0x18] sm:$0xff]
    %v98 = vld [vmem:[%s2 + $0x20] sm:$0xff]
    %100 = vset.pattern.permute.xlu0 0
    %101 = vperm.xlu0 %100, %v97
    %v102 = vpop.permute.xlu0 %101
    %105 = vset.pattern.permute.xlu0 0
    %106 = vperm.xlu0 %105, %v98
    %v107 = vpop.permute.xlu0 %106
    %vm109 = vcmask 195584
    %v111 = vsel %vm109, %v95, 0
    %v114 = vsel %vm109, %v96, 0
    %116 = vmatpush.msra.mxu0 0.0
    %117 = vmatpush.msra.mxu0 0.0
    %118 = vmatpush.msra.mxu0 0.0
    %119 = vmatpush.msra.mxu0 0.0
    %120 = vmatpush.msra.mxu0 0.0
    %121 = vmatpush.msra.mxu0 0.0
    %122 = vmatpush.msra.mxu0 0.0
    %123 = vmatpush.msra.mxu0 0.0
    %124 = vmatpush.msra.mxu0 0.0
    %125 = vmatpush.msra.mxu0 0.0
    %126 = vmatpush.msra.mxu0 0.0
    %127 = vmatpush.msra.mxu0 0.0
    %128 = vmatpush.msra.mxu0 0.0
    %129 = vmatpush.msra.mxu0 %v94
    %130 = vmatpush.msra.mxu0 %v93
    %131 = vmatpush.msra.mxu0 %v92
    %132 = vmatmul.f32.gmra.mxu0 %v111
    %v133 = vpop.f32.mrf.mxu0
    %v134 = vadd.f32 %v102, %v133
    %135 = vmatmul.f32.gmra.mxu0 %v114
    %v136 = vpop.f32.mrf.mxu0
    %v137 = vadd.f32 %v107, %v136
    %138 = vdwg.mxu0
    %v139 = vtanh.pop %v134
    %v140 = vtanh.pop %v137
    %v141 = vld [vmem:[%s1 + $0x28] sm:$0xff]
    %v142 = vld [vmem:[%s2 + $0x28] sm:$0xff]
    %144 = vset.pattern.permute.xlu0 0
    %145 = vperm.xlu0 %144, %v142
    %v146 = vpop.permute.xlu0 %145
    %vm148 = vcmask 130048
    %v150 = vsel %vm148, %v141, 0
    %152 = vmatpush.msra.mxu0 0.0
    %153 = vmatpush.msra.mxu0 0.0
    %154 = vmatpush.msra.mxu0 0.0
    %155 = vmatpush.msra.mxu0 0.0
    %156 = vmatpush.msra.mxu0 0.0
    %157 = vmatpush.msra.mxu0 0.0
    %158 = vmatpush.msra.mxu0 0.0
    %159 = vmatpush.msra.mxu0 0.0
    %160 = vmatpush.msra.mxu0 0.0
    %161 = vmatpush.msra.mxu0 0.0
    %162 = vmatpush.msra.mxu0 0.0
    %163 = vmatpush.msra.mxu0 0.0
    %164 = vmatpush.msra.mxu0 0.0
    %165 = vmatpush.msra.mxu0 0.0
    %166 = vmatpush.msra.mxu0 %v140
    %167 = vmatpush.msra.mxu0 %v139
    %168 = vmatmul.f32.gmra.mxu0 %v150
    %v169 = vpop.f32.mrf.mxu0
    %v170 = vadd.f32 %v146, %v169
    %171 = vdwg.mxu0
    %v172 = vtanh.pop %v170
    %173 = vst [vmem:[#allocation5] sm:$0xff] %v172
    // Predicated region
    $region18: #{tpu_custom_call.1} parent=1 // pred_check
      _
    $region19: #{tpu_custom_call.1} parent=1 // pred_check_branch
      %175 = sbr.rel (0) target = $region21
    $region20: #{tpu_custom_call.1} parent=1 // pred_region
      %177 = vsyncadd [#allocation4], 0
      %s179 = sshll.u32 [#allocation5], 4
      %s180 = int_to_ptr.vmem [resolvable:$true] %s179
      %s181 = sshll.u32 %s3, 4
      %s182 = int_to_ptr.hbm [resolvable:$true] %s181
      %184 = dma.vmem_to_hbm [thread:$0]  %s180, 128, %s182, [#allocation4]
    $region21: #{tpu_custom_call.1} parent=1 // pred_fallthru
      _
    // Predicated region
    $region22: #{tpu_custom_call.1} parent=1 // pred_check
      _
    $region23: #{tpu_custom_call.1} parent=1 // pred_check_branch
      %186 = sbr.rel (0) target = $region25
    $region24: #{tpu_custom_call.1} parent=1 // pred_region
      %188 = dma.done [#allocation4], 128
    $region25: #{tpu_custom_call.1} parent=1 // pred_fallthru
      _
    %189 = vsyncpa [#allocation3], 1
    %190 = vsyncpa [#allocation4], 1

</llo_original>
